<compile_context>
chip_gen: v6e
topology: v6e:2x2x1
jax: 0.10.0
libtpu: 0.0.40
codegen_flags: <defaults>
</compile_context>

<pallas_src>
import jax
import jax.numpy as jnp
from jax.experimental import pallas as pl
from jax.experimental.pallas import tpu as pltpu

BN_EPS = 1e-5

# Per-step HBM traffic at 131072 columns is ~2 MiB ((3+1) f32 per column), so
# the ~0.35 us fixed per-step overhead is <15% of the per-step DMA, while the
# double-buffered in+out tiles stay ~16 MiB of VMEM.
_TARGET_BLOCK_N = 131072
_MIN_BLOCK_N = 512

# Row offsets (8-aligned, lane 0) of each operand inside the packed param slab.
_W1_ROW, _B1_ROW, _W2_ROW, _B2_ROW, _W3_ROW, _B3_ROW = 0, 16, 32, 40, 48, 56
_SLAB_SHAPE = (64, 16)


def _mlp_kernel(x_ref, p_ref, o_ref):
    # Lane-dense (feature, batch) layout: the batch sits on the 128-lane axis.
    x = x_ref[...]                                    # (3, TN) f32

    # Static slices of the resident VMEM slab: zero-cost ref views + plain vlds.
    w1t = p_ref[_W1_ROW:_W1_ROW + 12, 0:3]            # (12, 3)  layer_1.weight^T
    b1  = p_ref[_B1_ROW:_B1_ROW + 12, 0:1]            # (12, 1)  layer_1.bias
    w2t = p_ref[_W2_ROW:_W2_ROW + 4, 0:12]            # (4, 12)  BN1 folded in
    b2  = p_ref[_B2_ROW:_B2_ROW + 4, 0:1]             # (4, 1)
    w3r = p_ref[_W3_ROW:_W3_ROW + 1, 0:4]             # (1, 4)   BN2 folded in
    b3  = p_ref[_B3_ROW:_B3_ROW + 1, 0:1]             # (1, 1)

    # layer_1 + ReLU   (BatchNorm1 folded into layer_2's weights/bias)
    h = jnp.dot(w1t, x, preferred_element_type=jnp.float32)           # (12, TN)
    h = jnp.maximum(h + b1, 0.0)

    # layer_2 + ReLU   (BatchNorm2 folded into layer_out's weights/bias)
    h = jnp.dot(w2t, h, preferred_element_type=jnp.float32)           # (4, TN)
    h = jnp.maximum(h + b2, 0.0)

    # dropout (eval) = identity; layer_out (4 -> 1) on the under-utilized MXU.
    out = jnp.dot(w3r, h, preferred_element_type=jnp.float32) + b3    # (1, TN)
    o_ref[...] = out.astype(o_ref.dtype)


def _pack_params(params):
    """Fold eval-mode BatchNorm into the following linear layer and pack all
    weights/biases into a single (64, 16) f32 slab (one resident VMEM operand)."""
    (w1, b1, g1, be1, rm1, rv1,
     w2, b2, g2, be2, rm2, rv2,
     w3, b3) = params

    s1 = g1 / jnp.sqrt(rv1 + BN_EPS)
    t1 = be1 - rm1 * s1
    s2 = g2 / jnp.sqrt(rv2 + BN_EPS)
    t2 = be2 - rm2 * s2

    w1t = w1.T                            # (12, 3)
    w2t = (s1[:, None] * w2).T            # (4, 12)   BN1 scale folded
    b2f = b2 + t1 @ w2                    # (4,)      BN1 shift folded
    w3r = (s2[:, None] * w3).T            # (1, 4)    BN2 scale folded
    b3f = b3 + t2 @ w3                    # (1,)      BN2 shift folded

    p = jnp.zeros(_SLAB_SHAPE, jnp.float32)
    p = p.at[_W1_ROW:_W1_ROW + 12, 0:3].set(w1t.astype(jnp.float32))
    p = p.at[_B1_ROW:_B1_ROW + 12, 0].set(b1.astype(jnp.float32))
    p = p.at[_W2_ROW:_W2_ROW + 4, 0:12].set(w2t.astype(jnp.float32))
    p = p.at[_B2_ROW:_B2_ROW + 4, 0].set(b2f.astype(jnp.float32))
    p = p.at[_W3_ROW, 0:4].set(w3r[0].astype(jnp.float32))
    p = p.at[_B3_ROW, 0].set(b3f[0].astype(jnp.float32))
    return p


def binary_classification_forward(x, params, *, block_n=None, feature_major=False):
    """Eval-mode forward.

    x: (N, 3) float32, or (3, N) if feature_major=True (skips the wrapper-side
       transpose, the only remaining extra HBM pass).
    Returns (N, 1) float32 logits.
    """
    slab = _pack_params(params)

    xt = x.astype(jnp.float32)
    if not feature_major:
        xt = xt.T                         # (3, N): batch on the lane axis
    N = xt.shape[1]

    if block_n is None:
        # >= ~8 grid steps for large N (2-TC load balance / pipelining on v7x),
        # capped at _TARGET_BLOCK_N (DMA amortization vs. VMEM budget), floored
        # so tiles never get pathologically thin.
        block_n = max(_MIN_BLOCK_N,
                      min(_TARGET_BLOCK_N, pl.cdiv(pl.cdiv(N, 8), 128) * 128))

    grid = (pl.cdiv(N, block_n),)         # ragged last tile: Pallas edge clamping

    out = pl.pallas_call(
        _mlp_kernel,
        out_shape=jax.ShapeDtypeStruct((1, N), jnp.float32),
        grid=grid,
        in_specs=[
            pl.BlockSpec((3, block_n), lambda i: (0, i)),     # x tile (pipelined)
            pl.BlockSpec(_SLAB_SHAPE, lambda i: (0, 0)),      # resident params
        ],
        out_specs=pl.BlockSpec((1, block_n), lambda i: (0, i)),
        compiler_params=pltpu.CompilerParams(
            dimension_semantics=("parallel",),
            # Double-buffered in+out tiles ~16 MiB at the max block; explicit
            # limit only matters on v5e (16 MiB default); == default on v6e/v7x.
            vmem_limit_bytes=32 * 1024 * 1024,
        ),
    )(xt, slab)

    return out.reshape(N, 1)


def init_params(key):
    """Deterministic parameter init matching the PyTorch module's shapes."""
    ks = jax.random.split(key, 6)

    def linear(kw, kb, fan_in, fan_out):
        bound = 1.0 / jnp.sqrt(fan_in)
        w = jax.random.uniform(kw, (fan_in, fan_out), jnp.float32, -bound, bound)
        b = jax.random.uniform(kb, (fan_out,), jnp.float32, -bound, bound)
        return w, b

    w1, b1 = linear(ks[0], ks[1], 3, 12)
    w2, b2 = linear(ks[2], ks[3], 12, 4)
    w3, b3 = linear(ks[4], ks[5], 4, 1)

    g1, be1 = jnp.ones((12,), jnp.float32), jnp.zeros((12,), jnp.float32)
    rm1, rv1 = jnp.zeros((12,), jnp.float32), jnp.ones((12,), jnp.float32)
    g2, be2 = jnp.ones((4,), jnp.float32), jnp.zeros((4,), jnp.float32)
    rm2, rv2 = jnp.zeros((4,), jnp.float32), jnp.ones((4,), jnp.float32)

    return (w1, b1, g1, be1, rm1, rv1,
            w2, b2, g2, be2, rm2, rv2,
            w3, b3)


def _reference(x, params):
    (w1, b1, g1, be1, rm1, rv1,
     w2, b2, g2, be2, rm2, rv2,
     w3, b3) = params
    h = jnp.maximum(x @ w1 + b1, 0.0)
    h = (h - rm1) / jnp.sqrt(rv1 + BN_EPS) * g1 + be1
    h = jnp.maximum(h @ w2 + b2, 0.0)
    h = (h - rm2) / jnp.sqrt(rv2 + BN_EPS) * g2 + be2
    return h @ w3 + b3


if __name__ == "__main__":
    key = jax.random.PRNGKey(0)
    k_x, k_p = jax.random.split(key)
    params = init_params(k_p)

    # Small default path.
    batch = 8
    x = jax.random.normal(k_x, (batch, 3), dtype=jnp.float32)
    out = jax.block_until_ready(binary_classification_forward(x, params))
    ref = _reference(x, params)
    assert out.shape == (batch, 1)
    assert jnp.allclose(out, ref, atol=1e-4, rtol=1e-5), (
        f"max err {jnp.max(jnp.abs(out - ref))}")

    # Multi-tile path with a ragged last tile (no host-side pad / slice).
    batch2 = 300
    x2 = jax.random.normal(jax.random.PRNGKey(1), (batch2, 3), dtype=jnp.float32)
    out2 = jax.block_until_ready(
        binary_classification_forward(x2, params, block_n=128))
    ref2 = _reference(x2, params)
    assert out2.shape == (batch2, 1)
    assert jnp.allclose(out2, ref2, atol=1e-4, rtol=1e-5), (
        f"max err {jnp.max(jnp.abs(out2 - ref2))}")

    # Feature-major fast path (caller supplies (3, N); skips wrapper transpose).
    out3 = jax.block_until_ready(
        binary_classification_forward(x2.T, params, block_n=128,
                                      feature_major=True))
    assert jnp.allclose(out3, ref2, atol=1e-4, rtol=1e-5)

    print("KERNEL_OK")
</pallas_src>

<mosaic_0001>
module attributes {stable_mosaic.version = 11 : i64} {
  func.func @_mlp_kernel(%arg0: i32, %arg1: memref<3x512xf32, #tpu.memory_space<vmem>>, %arg2: memref<64x16xf32, #tpu.memory_space<vmem>>, %arg3: memref<1x512xf32, #tpu.memory_space<vmem>>) attributes {dimension_semantics = [#tpu.dimension_semantics<parallel>], iteration_bounds = array<i64: 1>, scalar_prefetch = 0 : i64, scratch_operands = 0 : i64, tpu.core_type = #tpu.core_type<tc>, window_params = [{transform_indices = @transform_0, window_bounds = array<i64: 3, 512>}, {pipeline_mode = #tpu.pipeline_mode<synchronous>, transform_indices = @transform_1, window_bounds = array<i64: 64, 16>}, {transform_indices = @transform_2, window_bounds = array<i64: 1, 512>}]} {
    %c0 = arith.constant 0 : index
    %c0_0 = arith.constant 0 : index
    %0 = vector.load %arg1[%c0, %c0_0] : memref<3x512xf32, #tpu.memory_space<vmem>>, vector<3x512xf32>
    %c0_1 = arith.constant 0 : index
    %c0_2 = arith.constant 0 : index
    %1 = vector.load %arg2[%c0_1, %c0_2] : memref<64x16xf32, #tpu.memory_space<vmem>>, vector<12x3xf32>
    %c16 = arith.constant 16 : index
    %c0_3 = arith.constant 0 : index
    %2 = vector.load %arg2[%c16, %c0_3] : memref<64x16xf32, #tpu.memory_space<vmem>>, vector<12x1xf32>
    %c32 = arith.constant 32 : index
    %c0_4 = arith.constant 0 : index
    %3 = vector.load %arg2[%c32, %c0_4] : memref<64x16xf32, #tpu.memory_space<vmem>>, vector<4x12xf32>
    %c40 = arith.constant 40 : index
    %c0_5 = arith.constant 0 : index
    %4 = vector.load %arg2[%c40, %c0_5] : memref<64x16xf32, #tpu.memory_space<vmem>>, vector<4x1xf32>
    %c48 = arith.constant 48 : index
    %c0_6 = arith.constant 0 : index
    %5 = vector.load %arg2[%c48, %c0_6] : memref<64x16xf32, #tpu.memory_space<vmem>>, vector<1x4xf32>
    %c56 = arith.constant 56 : index
    %c0_7 = arith.constant 0 : index
    %6 = vector.load %arg2[%c56, %c0_7] : memref<64x16xf32, #tpu.memory_space<vmem>>, vector<1x1xf32>
    %cst = arith.constant dense<0.000000e+00> : vector<12x512xf32>
    %7 = tpu.matmul %1, %0, %cst {dimension_numbers = #tpu.dot_dimension_numbers<[1], [0], [0], [1], [0, 0, 1, 1], [], []>} : vector<12x3xf32>, vector<3x512xf32>, vector<12x512xf32> -> vector<12x512xf32>
    %8 = vector.broadcast %2 : vector<12x1xf32> to vector<12x512xf32>
    %9 = arith.addf %7, %8 : vector<12x512xf32>
    %cst_8 = arith.constant 0.000000e+00 : f32
    %10 = vector.broadcast %cst_8 : f32 to vector<12x512xf32>
    %11 = arith.maximumf %9, %10 : vector<12x512xf32>
    %cst_9 = arith.constant dense<0.000000e+00> : vector<4x512xf32>
    %12 = tpu.matmul %3, %11, %cst_9 {dimension_numbers = #tpu.dot_dimension_numbers<[1], [0], [0], [1], [0, 0, 1, 1], [], []>} : vector<4x12xf32>, vector<12x512xf32>, vector<4x512xf32> -> vector<4x512xf32>
    %13 = vector.broadcast %4 : vector<4x1xf32> to vector<4x512xf32>
    %14 = arith.addf %12, %13 : vector<4x512xf32>
    %cst_10 = arith.constant 0.000000e+00 : f32
    %15 = vector.broadcast %cst_10 : f32 to vector<4x512xf32>
    %16 = arith.maximumf %14, %15 : vector<4x512xf32>
    %cst_11 = arith.constant dense<0.000000e+00> : vector<1x512xf32>
    %17 = tpu.matmul %5, %16, %cst_11 {dimension_numbers = #tpu.dot_dimension_numbers<[1], [0], [0], [1], [0, 0, 1, 1], [], []>} : vector<1x4xf32>, vector<4x512xf32>, vector<1x512xf32> -> vector<1x512xf32>
    %18 = vector.broadcast %6 : vector<1x1xf32> to vector<1x512xf32>
    %19 = arith.addf %17, %18 : vector<1x512xf32>
    %c0_12 = arith.constant 0 : index
    %c0_13 = arith.constant 0 : index
    %20 = vector.load %arg3[%c0_12, %c0_13] : memref<1x512xf32, #tpu.memory_space<vmem>>, vector<1x512xf32>
    tpu.vector_store %arg3[%c0_12, %c0_13], %19 {strides = array<i32>} : memref<1x512xf32, #tpu.memory_space<vmem>>, vector<1x512xf32>,
    return
  }
  func.func @transform_0(%arg0: i32) -> (i32, i32) {
    %c0_i32 = arith.constant 0 : i32
    %c0_i32_0 = arith.constant 0 : i32
    return %c0_i32, %arg0 : i32, i32
  }
  func.func @transform_1(%arg0: i32) -> (i32, i32) {
    %c0_i32 = arith.constant 0 : i32
    %c0_i32_0 = arith.constant 0 : i32
    %c0_i32_1 = arith.constant 0 : i32
    return %c0_i32, %c0_i32_0 : i32, i32
  }
  func.func @transform_2(%arg0: i32) -> (i32, i32) {
    %c0_i32 = arith.constant 0 : i32
    %c0_i32_0 = arith.constant 0 : i32
    return %c0_i32, %arg0 : i32, i32
  }
}

</mosaic_0001>

<llo_original>
// kernel: tpu_custom_call.1
$region0: #{tpu_custom_call.1}
  #allocation0 [shape = 'u32[]', space=smem, size = 0x4, offset = 0x4, fixed_abs, tag = 'smem constant byte address 0x4 - core index']
  #allocation1 [shape = 'u32[144,128]{1,0:T(1,128)}', space=vmem, size = 0x12000, scoped, tag = 'internal scratch']
  %s0 = inlined_call_operand.vmem [shape: f32[3,8], index: 0, kind: input, shape index: {}]
  %s1 = inlined_call_operand.vmem [shape: f32[64,16], index: 1, kind: input, shape index: {}]
  %s2 = inlined_call_operand.hbm [shape: f32[1,8], index: 2, kind: output, shape index: {}]
  %s3 = sld [smem:[#allocation0]]
  $region18: #{tpu_custom_call.1} parent=0
    _
  %s5 = ssub.s32 1, %s3
  %s6 = scalar_select 0, %s5, %s3
  $region1: #{tpu_custom_call.1} parent=0
    #allocation2 [shape = 'u8[2048]{0}', space=vmem, size = 0x800, scoped, tag = 'output window, operand 0, single buffered']
    #allocation3 [shape = 's32[1]{0}', space=sflag, size = 0x4, scoped, tag = 'scoped memory for tpu_custom_call.1']
    %7 = vsyncpa [#allocation3], 0
    // Predicated region
    $region2: #{tpu_custom_call.1} parent=1 // pred_check
      _
    $region3: #{tpu_custom_call.1} parent=1 // pred_check_branch
      %9 = sbr.rel (0) target = $region5
    $region4: #{tpu_custom_call.1} parent=1 // pred_region
      _
    $region5: #{tpu_custom_call.1} parent=1 // pred_fallthru
      _
    // Predicated region
    $region6: #{tpu_custom_call.1} parent=1 // pred_check
      _
    $region7: #{tpu_custom_call.1} parent=1 // pred_check_branch
      %11 = sbr.rel (0) target = $region9
    $region8: #{tpu_custom_call.1} parent=1 // pred_region
      _
    $region9: #{tpu_custom_call.1} parent=1 // pred_fallthru
      _
    %v12 = vld [vmem:[%s0] sm:$0x77]
    %v13 = vld [vmem:[%s0 + $0x8] sm:$0x77]
    %v14 = vld [vmem:[%s1] sm:$0xff]
    %v15 = vld [vmem:[%s1 + $0x8] sm:$0xf]
    %v16 = vld [vmem:[%s1 + $0x10] sm:$0xff]
    %v17 = vld [vmem:[%s1 + $0x18] sm:$0xf]
    %v18 = vld [vmem:[%s1 + $0x20] sm:$0xf]
    %v19 = vld [vmem:[%s1 + $0x28] sm:$0xf]
    %v20 = vld [vmem:[%s1 + $0x30] sm:$0x1]
    %v21 = vld [vmem:[%s1 + $0x38] sm:$0x1]
    %23 = vset.pattern.permute.xlu0 0
    %24 = vperm.xlu0 %23, %v16
    %v25 = vpop.permute.xlu0 %24
    %28 = vset.pattern.permute.xlu0 0
    %29 = vperm.xlu0 %28, %v17
    %v30 = vpop.permute.xlu0 %29
    %v34 = vcombine.high %v12, %v12
    %v35 = vcombine.high %v13, %v13
    %vm36 = vcmask 23552
    %v38 = vsel %vm36, %v14, 0
    %v41 = vsel %vm36, %v15, 0
    %vm43 = vcmask 1042432
    %v44 = vsel %vm43, %v12, 0
    %v46 = vsel %vm43, %v34, 0
    %v48 = vsel %vm43, %v13, 0
    %v50 = vsel %vm43, %v35, 0
    %52 = vmatprep.subr.mxu0 0.0
    %53 = vmatpush1.msra.mxu0 0.0
    %54 = vmatprep.subr.mxu0 0.0
    %55 = vmatpush1.msra.mxu0 0.0
    %56 = vmatprep.subr.mxu0 0.0
    %57 = vmatpush1.msra.mxu0 0.0
    %58 = vmatprep.subr.mxu0 0.0
    %59 = vmatpush1.msra.mxu0 0.0
    %60 = vmatprep.subr.mxu0 0.0
    %61 = vmatpush1.msra.mxu0 0.0
    %62 = vmatprep.subr.mxu0 0.0
    %63 = vmatpush1.msra.mxu0 0.0
    %64 = vmatprep.subr.mxu0 0.0
    %65 = vmatpush1.msra.mxu0 0.0
    %66 = vmatprep.subr.mxu0 0.0
    %67 = vmatpush1.msra.mxu0 0.0
    %68 = vmatprep.subr.mxu0 0.0
    %69 = vmatpush1.msra.mxu0 0.0
    %70 = vmatprep.subr.mxu0 0.0
    %71 = vmatpush1.msra.mxu0 0.0
    %72 = vmatprep.subr.mxu0 0.0
    %73 = vmatpush1.msra.mxu0 0.0
    %74 = vmatprep.subr.mxu0 0.0
    %75 = vmatpush1.msra.mxu0 0.0
    %76 = vmatprep.subr.mxu0 0.0
    %77 = vmatpush1.msra.mxu0 0.0
    %78 = vmatprep.subr.mxu0 0.0
    %79 = vmatpush1.msra.mxu0 0.0
    %80 = vmatprep.subr.mxu0 0.0
    %81 = vmatpush1.msra.mxu0 0.0
    %82 = vmatprep.subr.mxu0 %v46
    %83 = vmatpush1.msra.mxu0 %v44
    %84 = vmatprep.subr.mxu0 0.0
    %85 = vmatpush2.msra.mxu0 0.0
    %86 = vmatprep.subr.mxu0 0.0
    %87 = vmatpush2.msra.mxu0 0.0
    %88 = vmatprep.subr.mxu0 0.0
    %89 = vmatpush2.msra.mxu0 0.0
    %90 = vmatprep.subr.mxu0 0.0
    %91 = vmatpush2.msra.mxu0 0.0
    %92 = vmatprep.subr.mxu0 0.0
    %93 = vmatpush2.msra.mxu0 0.0
    %94 = vmatprep.subr.mxu0 0.0
    %95 = vmatpush2.msra.mxu0 0.0
    %96 = vmatprep.subr.mxu0 0.0
    %97 = vmatpush2.msra.mxu0 0.0
    %98 = vmatprep.subr.mxu0 0.0
    %99 = vmatpush2.msra.mxu0 0.0
    %100 = vmatprep.subr.mxu0 0.0
    %101 = vmatpush2.msra.mxu0 0.0
    %102 = vmatprep.subr.mxu0 0.0
    %103 = vmatpush2.msra.mxu0 0.0
    %104 = vmatprep.subr.mxu0 0.0
    %105 = vmatpush2.msra.mxu0 0.0
    %106 = vmatprep.subr.mxu0 0.0
    %107 = vmatpush2.msra.mxu0 0.0
    %108 = vmatprep.subr.mxu0 0.0
    %109 = vmatpush2.msra.mxu0 0.0
    %110 = vmatprep.subr.mxu0 0.0
    %111 = vmatpush2.msra.mxu0 0.0
    %112 = vmatprep.subr.mxu0 0.0
    %113 = vmatpush2.msra.mxu0 0.0
    %114 = vmatprep.subr.mxu0 0.0
    %115 = vmatpush2.msra.mxu0 0.0
    %116 = vmatprep.mubr.f32.mxu0 0.0
    %117 = vmatmul.mubr.f32.gmra.mxu0 %v38
    %v118 = vpop.f32.mrf.mxu0
    %v119 = vadd.f32 %v25, %v118
    %v120 = vpop.f32.mrf.mxu0
    %v121 = vadd.f32 %v25, %v120
    %122 = vmatprep.mubr.f32.mxu0 0.0
    %123 = vmatmul.mubr.f32.gmra.mxu0 %v41
    %v124 = vpop.f32.mrf.mxu0
    %v125 = vadd.f32 %v30, %v124
    %v126 = vpop.f32.mrf.mxu0
    %v127 = vadd.f32 %v30, %v126
    %128 = vdwg.mxu0
    %129 = vmatprep.subr.mxu0 0.0
    %130 = vmatpush1.msra.mxu0 0.0
    %131 = vmatprep.subr.mxu0 0.0
    %132 = vmatpush1.msra.mxu0 0.0
    %133 = vmatprep.subr.mxu0 0.0
    %134 = vmatpush1.msra.mxu0 0.0
    %135 = vmatprep.subr.mxu0 0.0
    %136 = vmatpush1.msra.mxu0 0.0
    %137 = vmatprep.subr.mxu0 0.0
    %138 = vmatpush1.msra.mxu0 0.0
    %139 = vmatprep.subr.mxu0 0.0
    %140 = vmatpush1.msra.mxu0 0.0
    %141 = vmatprep.subr.mxu0 0.0
    %142 = vmatpush1.msra.mxu0 0.0
    %143 = vmatprep.subr.mxu0 0.0
    %144 = vmatpush1.msra.mxu0 0.0
    %145 = vmatprep.subr.mxu0 0.0
    %146 = vmatpush1.msra.mxu0 0.0
    %147 = vmatprep.subr.mxu0 0.0
    %148 = vmatpush1.msra.mxu0 0.0
    %149 = vmatprep.subr.mxu0 0.0
    %150 = vmatpush1.msra.mxu0 0.0
    %151 = vmatprep.subr.mxu0 0.0
    %152 = vmatpush1.msra.mxu0 0.0
    %153 = vmatprep.subr.mxu0 0.0
    %154 = vmatpush1.msra.mxu0 0.0
    %155 = vmatprep.subr.mxu0 0.0
    %156 = vmatpush1.msra.mxu0 0.0
    %157 = vmatprep.subr.mxu0 0.0
    %158 = vmatpush1.msra.mxu0 0.0
    %159 = vmatprep.subr.mxu0 %v50
    %160 = vmatpush1.msra.mxu0 %v48
    %161 = vmatprep.subr.mxu0 0.0
    %162 = vmatpush2.msra.mxu0 0.0
    %163 = vmatprep.subr.mxu0 0.0
    %164 = vmatpush2.msra.mxu0 0.0
    %165 = vmatprep.subr.mxu0 0.0
    %166 = vmatpush2.msra.mxu0 0.0
    %167 = vmatprep.subr.mxu0 0.0
    %168 = vmatpush2.msra.mxu0 0.0
    %169 = vmatprep.subr.mxu0 0.0
    %170 = vmatpush2.msra.mxu0 0.0
    %171 = vmatprep.subr.mxu0 0.0
    %172 = vmatpush2.msra.mxu0 0.0
    %173 = vmatprep.subr.mxu0 0.0
    %174 = vmatpush2.msra.mxu0 0.0
    %175 = vmatprep.subr.mxu0 0.0
    %176 = vmatpush2.msra.mxu0 0.0
    %177 = vmatprep.subr.mxu0 0.0
    %178 = vmatpush2.msra.mxu0 0.0
    %179 = vmatprep.subr.mxu0 0.0
    %180 = vmatpush2.msra.mxu0 0.0
    %181 = vmatprep.subr.mxu0 0.0
    %182 = vmatpush2.msra.mxu0 0.0
    %183 = vmatprep.subr.mxu0 0.0
    %184 = vmatpush2.msra.mxu0 0.0
    %185 = vmatprep.subr.mxu0 0.0
    %186 = vmatpush2.msra.mxu0 0.0
    %187 = vmatprep.subr.mxu0 0.0
    %188 = vmatpush2.msra.mxu0 0.0
    %189 = vmatprep.subr.mxu0 0.0
    %190 = vmatpush2.msra.mxu0 0.0
    %191 = vmatprep.subr.mxu0 0.0
    %192 = vmatpush2.msra.mxu0 0.0
    %193 = vmatprep.mubr.f32.mxu0 0.0
    %194 = vmatmul.mubr.f32.gmra.mxu0 %v38
    %v195 = vpop.f32.mrf.mxu0
    %v196 = vadd.f32 %v25, %v195
    %v197 = vpop.f32.mrf.mxu0
    %v198 = vadd.f32 %v25, %v197
    %199 = vmatprep.mubr.f32.mxu0 0.0
    %200 = vmatmul.mubr.f32.gmra.mxu0 %v41
    %v201 = vpop.f32.mrf.mxu0
    %v202 = vadd.f32 %v30, %v201
    %v203 = vpop.f32.mrf.mxu0
    %v204 = vadd.f32 %v30, %v203
    %205 = vdwg.mxu0
    %v206 = vmax.f32 %v119, 0.0
    %v207 = vmax.f32 %v121, 0.0
    %v208 = vmax.f32 %v196, 0.0
    %v209 = vmax.f32 %v198, 0.0
    %v210 = vmax.f32 %v125, 0.0
    %v211 = vmax.f32 %v127, 0.0
    %v212 = vmax.f32 %v202, 0.0
    %v213 = vmax.f32 %v204, 0.0
    %215 = vset.pattern.permute.xlu0 0
    %216 = vperm.xlu0 %215, %v19
    %v217 = vpop.permute.xlu0 %216
    %vm219 = vcmask 97280
    %v221 = vsel %vm219, %v18, 0
    %vm223 = vcmask 1043456
    %v225 = vsel %vm223, %v210, 0
    %v228 = vsel %vm223, %v211, 0
    %v231 = vsel %vm223, %v212, 0
    %v234 = vsel %vm223, %v213, 0
    %236 = vmatprep.subr.mxu0 0.0
    %237 = vmatpush1.msra.mxu0 0.0
    %238 = vmatprep.subr.mxu0 0.0
    %239 = vmatpush1.msra.mxu0 0.0
    %240 = vmatprep.subr.mxu0 0.0
    %241 = vmatpush1.msra.mxu0 0.0
    %242 = vmatprep.subr.mxu0 0.0
    %243 = vmatpush1.msra.mxu0 0.0
    %244 = vmatprep.subr.mxu0 0.0
    %245 = vmatpush1.msra.mxu0 0.0
    %246 = vmatprep.subr.mxu0 0.0
    %247 = vmatpush1.msra.mxu0 0.0
    %248 = vmatprep.subr.mxu0 0.0
    %249 = vmatpush1.msra.mxu0 0.0
    %250 = vmatprep.subr.mxu0 0.0
    %251 = vmatpush1.msra.mxu0 0.0
    %252 = vmatprep.subr.mxu0 0.0
    %253 = vmatpush1.msra.mxu0 0.0
    %254 = vmatprep.subr.mxu0 0.0
    %255 = vmatpush1.msra.mxu0 0.0
    %256 = vmatprep.subr.mxu0 0.0
    %257 = vmatpush1.msra.mxu0 0.0
    %258 = vmatprep.subr.mxu0 0.0
    %259 = vmatpush1.msra.mxu0 0.0
    %260 = vmatprep.subr.mxu0 0.0
    %261 = vmatpush1.msra.mxu0 0.0
    %262 = vmatprep.subr.mxu0 0.0
    %263 = vmatpush1.msra.mxu0 0.0
    %264 = vmatprep.subr.mxu0 %v228
    %265 = vmatpush1.msra.mxu0 %v225
    %266 = vmatprep.subr.mxu0 %v207
    %267 = vmatpush1.msra.mxu0 %v206
    %268 = vmatprep.subr.mxu0 0.0
    %269 = vmatpush2.msra.mxu0 0.0
    %270 = vmatprep.subr.mxu0 0.0
    %271 = vmatpush2.msra.mxu0 0.0
    %272 = vmatprep.subr.mxu0 0.0
    %273 = vmatpush2.msra.mxu0 0.0
    %274 = vmatprep.subr.mxu0 0.0
    %275 = vmatpush2.msra.mxu0 0.0
    %276 = vmatprep.subr.mxu0 0.0
    %277 = vmatpush2.msra.mxu0 0.0
    %278 = vmatprep.subr.mxu0 0.0
    %279 = vmatpush2.msra.mxu0 0.0
    %280 = vmatprep.subr.mxu0 0.0
    %281 = vmatpush2.msra.mxu0 0.0
    %282 = vmatprep.subr.mxu0 0.0
    %283 = vmatpush2.msra.mxu0 0.0
    %284 = vmatprep.subr.mxu0 0.0
    %285 = vmatpush2.msra.mxu0 0.0
    %286 = vmatprep.subr.mxu0 0.0
    %287 = vmatpush2.msra.mxu0 0.0
    %288 = vmatprep.subr.mxu0 0.0
    %289 = vmatpush2.msra.mxu0 0.0
    %290 = vmatprep.subr.mxu0 0.0
    %291 = vmatpush2.msra.mxu0 0.0
    %292 = vmatprep.subr.mxu0 0.0
    %293 = vmatpush2.msra.mxu0 0.0
    %294 = vmatprep.subr.mxu0 0.0
    %295 = vmatpush2.msra.mxu0 0.0
    %296 = vmatprep.subr.mxu0 0.0
    %297 = vmatpush2.msra.mxu0 0.0
    %298 = vmatprep.subr.mxu0 0.0
    %299 = vmatpush2.msra.mxu0 0.0
    %300 = vmatprep.mubr.f32.mxu0 0.0
    %301 = vmatmul.mubr.f32.gmra.mxu0 %v221
    %v302 = vpop.f32.mrf.mxu0
    %v303 = vadd.f32 %v217, %v302
    %v304 = vpop.f32.mrf.mxu0
    %v305 = vadd.f32 %v217, %v304
    %306 = vdwg.mxu0
    %307 = vmatprep.subr.mxu0 0.0
    %308 = vmatpush1.msra.mxu0 0.0
    %309 = vmatprep.subr.mxu0 0.0
    %310 = vmatpush1.msra.mxu0 0.0
    %311 = vmatprep.subr.mxu0 0.0
    %312 = vmatpush1.msra.mxu0 0.0
    %313 = vmatprep.subr.mxu0 0.0
    %314 = vmatpush1.msra.mxu0 0.0
    %315 = vmatprep.subr.mxu0 0.0
    %316 = vmatpush1.msra.mxu0 0.0
    %317 = vmatprep.subr.mxu0 0.0
    %318 = vmatpush1.msra.mxu0 0.0
    %319 = vmatprep.subr.mxu0 0.0
    %320 = vmatpush1.msra.mxu0 0.0
    %321 = vmatprep.subr.mxu0 0.0
    %322 = vmatpush1.msra.mxu0 0.0
    %323 = vmatprep.subr.mxu0 0.0
    %324 = vmatpush1.msra.mxu0 0.0
    %325 = vmatprep.subr.mxu0 0.0
    %326 = vmatpush1.msra.mxu0 0.0
    %327 = vmatprep.subr.mxu0 0.0
    %328 = vmatpush1.msra.mxu0 0.0
    %329 = vmatprep.subr.mxu0 0.0
    %330 = vmatpush1.msra.mxu0 0.0
    %331 = vmatprep.subr.mxu0 0.0
    %332 = vmatpush1.msra.mxu0 0.0
    %333 = vmatprep.subr.mxu0 0.0
    %334 = vmatpush1.msra.mxu0 0.0
    %335 = vmatprep.subr.mxu0 %v234
    %336 = vmatpush1.msra.mxu0 %v231
    %337 = vmatprep.subr.mxu0 %v209
    %338 = vmatpush1.msra.mxu0 %v208
    %339 = vmatprep.subr.mxu0 0.0
    %340 = vmatpush2.msra.mxu0 0.0
    %341 = vmatprep.subr.mxu0 0.0
    %342 = vmatpush2.msra.mxu0 0.0
    %343 = vmatprep.subr.mxu0 0.0
    %344 = vmatpush2.msra.mxu0 0.0
    %345 = vmatprep.subr.mxu0 0.0
    %346 = vmatpush2.msra.mxu0 0.0
    %347 = vmatprep.subr.mxu0 0.0
    %348 = vmatpush2.msra.mxu0 0.0
    %349 = vmatprep.subr.mxu0 0.0
    %350 = vmatpush2.msra.mxu0 0.0
    %351 = vmatprep.subr.mxu0 0.0
    %352 = vmatpush2.msra.mxu0 0.0
    %353 = vmatprep.subr.mxu0 0.0
    %354 = vmatpush2.msra.mxu0 0.0
    %355 = vmatprep.subr.mxu0 0.0
    %356 = vmatpush2.msra.mxu0 0.0
    %357 = vmatprep.subr.mxu0 0.0
    %358 = vmatpush2.msra.mxu0 0.0
    %359 = vmatprep.subr.mxu0 0.0
    %360 = vmatpush2.msra.mxu0 0.0
    %361 = vmatprep.subr.mxu0 0.0
    %362 = vmatpush2.msra.mxu0 0.0
    %363 = vmatprep.subr.mxu0 0.0
    %364 = vmatpush2.msra.mxu0 0.0
    %365 = vmatprep.subr.mxu0 0.0
    %366 = vmatpush2.msra.mxu0 0.0
    %367 = vmatprep.subr.mxu0 0.0
    %368 = vmatpush2.msra.mxu0 0.0
    %369 = vmatprep.subr.mxu0 0.0
    %370 = vmatpush2.msra.mxu0 0.0
    %371 = vmatprep.mubr.f32.mxu0 0.0
    %372 = vmatmul.mubr.f32.gmra.mxu0 %v221
    %v373 = vpop.f32.mrf.mxu0
    %v374 = vadd.f32 %v217, %v373
    %v375 = vpop.f32.mrf.mxu0
    %v376 = vadd.f32 %v217, %v375
    %377 = vdwg.mxu0
    %v378 = vmax.f32 %v303, 0.0
    %v379 = vmax.f32 %v305, 0.0
    %v380 = vmax.f32 %v374, 0.0
    %v381 = vmax.f32 %v376, 0.0
    %383 = vset.pattern.permute.xlu0 0
    %384 = vperm.xlu0 %383, %v21
    %v385 = vpop.permute.xlu0 %384
    %vm387 = vcmask 31744
    %v389 = vsel %vm387, %v20, 0
    %v392 = vsel %vm223, %v378, 0
    %v395 = vsel %vm223, %v379, 0
    %v398 = vsel %vm223, %v380, 0
    %v401 = vsel %vm223, %v381, 0
    %403 = vmatprep.subr.mxu0 0.0
    %404 = vmatpush1.msra.mxu0 0.0
    %405 = vmatprep.subr.mxu0 0.0
    %406 = vmatpush1.msra.mxu0 0.0
    %407 = vmatprep.subr.mxu0 0.0
    %408 = vmatpush1.msra.mxu0 0.0
    %409 = vmatprep.subr.mxu0 0.0
    %410 = vmatpush1.msra.mxu0 0.0
    %411 = vmatprep.subr.mxu0 0.0
    %412 = vmatpush1.msra.mxu0 0.0
    %413 = vmatprep.subr.mxu0 0.0
    %414 = vmatpush1.msra.mxu0 0.0
    %415 = vmatprep.subr.mxu0 0.0
    %416 = vmatpush1.msra.mxu0 0.0
    %417 = vmatprep.subr.mxu0 0.0
    %418 = vmatpush1.msra.mxu0 0.0
    %419 = vmatprep.subr.mxu0 0.0
    %420 = vmatpush1.msra.mxu0 0.0
    %421 = vmatprep.subr.mxu0 0.0
    %422 = vmatpush1.msra.mxu0 0.0
    %423 = vmatprep.subr.mxu0 0.0
    %424 = vmatpush1.msra.mxu0 0.0
    %425 = vmatprep.subr.mxu0 0.0
    %426 = vmatpush1.msra.mxu0 0.0
    %427 = vmatprep.subr.mxu0 0.0
    %428 = vmatpush1.msra.mxu0 0.0
    %429 = vmatprep.subr.mxu0 0.0
    %430 = vmatpush1.msra.mxu0 0.0
    %431 = vmatprep.subr.mxu0 0.0
    %432 = vmatpush1.msra.mxu0 0.0
    %433 = vmatprep.subr.mxu0 %v395
    %434 = vmatpush1.msra.mxu0 %v392
    %435 = vmatprep.subr.mxu0 0.0
    %436 = vmatpush2.msra.mxu0 0.0
    %437 = vmatprep.subr.mxu0 0.0
    %438 = vmatpush2.msra.mxu0 0.0
    %439 = vmatprep.subr.mxu0 0.0
    %440 = vmatpush2.msra.mxu0 0.0
    %441 = vmatprep.subr.mxu0 0.0
    %442 = vmatpush2.msra.mxu0 0.0
    %443 = vmatprep.subr.mxu0 0.0
    %444 = vmatpush2.msra.mxu0 0.0
    %445 = vmatprep.subr.mxu0 0.0
    %446 = vmatpush2.msra.mxu0 0.0
    %447 = vmatprep.subr.mxu0 0.0
    %448 = vmatpush2.msra.mxu0 0.0
    %449 = vmatprep.subr.mxu0 0.0
    %450 = vmatpush2.msra.mxu0 0.0
    %451 = vmatprep.subr.mxu0 0.0
    %452 = vmatpush2.msra.mxu0 0.0
    %453 = vmatprep.subr.mxu0 0.0
    %454 = vmatpush2.msra.mxu0 0.0
    %455 = vmatprep.subr.mxu0 0.0
    %456 = vmatpush2.msra.mxu0 0.0
    %457 = vmatprep.subr.mxu0 0.0
    %458 = vmatpush2.msra.mxu0 0.0
    %459 = vmatprep.subr.mxu0 0.0
    %460 = vmatpush2.msra.mxu0 0.0
    %461 = vmatprep.subr.mxu0 0.0
    %462 = vmatpush2.msra.mxu0 0.0
    %463 = vmatprep.subr.mxu0 0.0
    %464 = vmatpush2.msra.mxu0 0.0
    %465 = vmatprep.subr.mxu0 0.0
    %466 = vmatpush2.msra.mxu0 0.0
    %467 = vmatprep.mubr.f32.mxu0 0.0
    %468 = vmatmul.mubr.f32.gmra.mxu0 %v389
    %v469 = vpop.f32.mrf.mxu0
    %v470 = vadd.f32 %v385, %v469
    %v471 = vpop.f32.mrf.mxu0
    %v472 = vadd.f32 %v385, %v471
    %473 = vdwg.mxu0
    %474 = vmatprep.subr.mxu0 0.0
    %475 = vmatpush1.msra.mxu0 0.0
    %476 = vmatprep.subr.mxu0 0.0
    %477 = vmatpush1.msra.mxu0 0.0
    %478 = vmatprep.subr.mxu0 0.0
    %479 = vmatpush1.msra.mxu0 0.0
    %480 = vmatprep.subr.mxu0 0.0
    %481 = vmatpush1.msra.mxu0 0.0
    %482 = vmatprep.subr.mxu0 0.0
    %483 = vmatpush1.msra.mxu0 0.0
    %484 = vmatprep.subr.mxu0 0.0
    %485 = vmatpush1.msra.mxu0 0.0
    %486 = vmatprep.subr.mxu0 0.0
    %487 = vmatpush1.msra.mxu0 0.0
    %488 = vmatprep.subr.mxu0 0.0
    %489 = vmatpush1.msra.mxu0 0.0
    %490 = vmatprep.subr.mxu0 0.0
    %491 = vmatpush1.msra.mxu0 0.0
    %492 = vmatprep.subr.mxu0 0.0
    %493 = vmatpush1.msra.mxu0 0.0
    %494 = vmatprep.subr.mxu0 0.0
    %495 = vmatpush1.msra.mxu0 0.0
    %496 = vmatprep.subr.mxu0 0.0
    %497 = vmatpush1.msra.mxu0 0.0
    %498 = vmatprep.subr.mxu0 0.0
    %499 = vmatpush1.msra.mxu0 0.0
    %500 = vmatprep.subr.mxu0 0.0
    %501 = vmatpush1.msra.mxu0 0.0
    %502 = vmatprep.subr.mxu0 0.0
    %503 = vmatpush1.msra.mxu0 0.0
    %504 = vmatprep.subr.mxu0 %v401
    %505 = vmatpush1.msra.mxu0 %v398
    %506 = vmatprep.subr.mxu0 0.0
    %507 = vmatpush2.msra.mxu0 0.0
    %508 = vmatprep.subr.mxu0 0.0
    %509 = vmatpush2.msra.mxu0 0.0
    %510 = vmatprep.subr.mxu0 0.0
    %511 = vmatpush2.msra.mxu0 0.0
    %512 = vmatprep.subr.mxu0 0.0
    %513 = vmatpush2.msra.mxu0 0.0
    %514 = vmatprep.subr.mxu0 0.0
    %515 = vmatpush2.msra.mxu0 0.0
    %516 = vmatprep.subr.mxu0 0.0
    %517 = vmatpush2.msra.mxu0 0.0
    %518 = vmatprep.subr.mxu0 0.0
    %519 = vmatpush2.msra.mxu0 0.0
    %520 = vmatprep.subr.mxu0 0.0
    %521 = vmatpush2.msra.mxu0 0.0
    %522 = vmatprep.subr.mxu0 0.0
    %523 = vmatpush2.msra.mxu0 0.0
    %524 = vmatprep.subr.mxu0 0.0
    %525 = vmatpush2.msra.mxu0 0.0
    %526 = vmatprep.subr.mxu0 0.0
    %527 = vmatpush2.msra.mxu0 0.0
    %528 = vmatprep.subr.mxu0 0.0
    %529 = vmatpush2.msra.mxu0 0.0
    %530 = vmatprep.subr.mxu0 0.0
    %531 = vmatpush2.msra.mxu0 0.0
    %532 = vmatprep.subr.mxu0 0.0
    %533 = vmatpush2.msra.mxu0 0.0
    %534 = vmatprep.subr.mxu0 0.0
    %535 = vmatpush2.msra.mxu0 0.0
    %536 = vmatprep.subr.mxu0 0.0
    %537 = vmatpush2.msra.mxu0 0.0
    %538 = vmatprep.mubr.f32.mxu0 0.0
    %539 = vmatmul.mubr.f32.gmra.mxu0 %v389
    %v540 = vpop.f32.mrf.mxu0
    %v541 = vadd.f32 %v385, %v540
    %v542 = vpop.f32.mrf.mxu0
    %v543 = vadd.f32 %v385, %v542
    %544 = vdwg.mxu0
    %v549 = vcombine.low %v470, %v472
    %v550 = vcombine.low %v541, %v543
    %v552 = vunpack.c.l.s4 1966171168
    %v553 = vunpack.c.0.s8 %v552
    %v554 = vlaneseq
    %v555 = vshrl.u32 %v554, 7
    %v556 = vsub.s32 %v553, %v555
    %v557 = vrot.slane %v549, %v556
    %v559 = vunpack.c.l.s4 1966171168
    %v560 = vunpack.c.0.s8 %v559
    %v561 = vlaneseq
    %v562 = vshrl.u32 %v561, 7
    %v563 = vsub.s32 %v560, %v562
    %v564 = vrot.slane %v550, %v563
    %v565 = vcombine.low %v557, %v564
    %v567 = vunpack.c.l.s4 1966171168
    %v568 = vunpack.c.0.s8 %v567
    %v569 = vlaneseq
    %v570 = vshrl.u32 %v569, 7
    %v571 = vsub.s32 %v568, %v570
    %v572 = vrot.slane %v565, %v571
    %v574 = vlaneseq
    %vm575 = vcmp.ge.s32.totalorder %v574, 0
    %vm576 = vcmp.lt.s32.totalorder %v574, 512
    %vm577 = vmand %vm575, %vm576
    %578 = vst.msk [vmem:[#allocation2] sm:$0xf] %vm577, %v572
    // Predicated region
    $region10: #{tpu_custom_call.1} parent=1 // pred_check
      _
    $region11: #{tpu_custom_call.1} parent=1 // pred_check_branch
      %580 = sbr.rel (0) target = $region13
    $region12: #{tpu_custom_call.1} parent=1 // pred_region
      %s582 = ssub.s32 64, 16
      %583 = vsyncadd [#allocation3], %s582
      %s585 = sshll.u32 [#allocation2], 4
      %s586 = int_to_ptr.vmem [resolvable:$true] %s585
      %588 = dma.vmem_to_hbm [thread:$0]  %s586, 16, %s2, [#allocation3]
    $region13: #{tpu_custom_call.1} parent=1 // pred_fallthru
      _
    // Predicated region
    $region14: #{tpu_custom_call.1} parent=1 // pred_check
      _
    $region15: #{tpu_custom_call.1} parent=1 // pred_check_branch
      %590 = sbr.rel (0) target = $region17
    $region16: #{tpu_custom_call.1} parent=1 // pred_region
      %591 = dma.done [#allocation3], 64
    $region17: #{tpu_custom_call.1} parent=1 // pred_fallthru
      _
    %592 = vsyncpa [#allocation3], 1

</llo_original>
